<compile_context>
chip_gen: v7x
topology: tpu7x:2x2x1
jax: 0.10.0
libtpu: 0.0.40
codegen_flags: <defaults>
</compile_context>

<pallas_src>
import jax
import jax.numpy as jnp
from jax.experimental import pallas as pl
from jax.experimental.pallas import tpu as pltpu


def _cdiv(a, b):
    return -(-a // b)


def _round_up(x, m):
    return _cdiv(x, m) * m


def _pick_tile(total, max_tile, align):
    """Pick (tile, n_tiles, padded_total) so padded_total = n*tile >= total with
    minimal padding and tile a multiple of `align`."""
    n = _cdiv(total, max_tile)
    tile = _round_up(_cdiv(total, n), align)
    return tile, n, n * tile


def _nplm_kernel(xh_ref, wu_ref, b_ref, o_ref):
    # xh_ref : (TB, K_pad)   param_dtype   ([x | hidden])
    # wu_ref : (K_pad, TN)   param_dtype   ([W ; U] vocab tile)
    # b_ref  : (1, TN)       f32
    # o_ref  : (TB, TN)      out_dtype
    o_ref[...] = (
        b_ref[...]
        + jnp.dot(xh_ref[...], wu_ref[...], preferred_element_type=jnp.float32)
    ).astype(o_ref.dtype)


def make_nplm_forward(C, H, W, d, U, b, *, n_step, embed_size,
                      param_dtype=jnp.bfloat16, out_dtype=jnp.float32,
                      tb=256, tn=1024):
    """One-time parameter prep; returns forward(X_idx) -> (B, VOCAB) logits."""
    F = n_step * embed_size
    HID = H.shape[1]
    V = W.shape[1]
    assert H.shape[0] == F and W.shape[0] == F and U.shape[0] == HID

    # Padded contraction dims (multiples of 16 for bf16 sublane packing). Padding
    # rows/cols are zero, so results are exactly unchanged.
    F_pad = _round_up(F, 16)
    HID_pad = _round_up(HID, 16)
    K_pad = F_pad + HID_pad

    # Vocab tiling is fixed at prep time so the big weights are padded exactly once.
    TN, nv, V_pad = _pick_tile(V, tn, 128)

    # ---- one-time parameter prep (hoisted out of the per-call forward path) ----
    Cq = C.astype(param_dtype)                                          # (VOCAB, EMBED)
    Hq = jnp.pad(H.astype(param_dtype), ((0, F_pad - F), (0, 0)))       # (F_pad, HID)
    Wp = jnp.pad(W, ((0, F_pad - F), (0, V_pad - V)))
    Up = jnp.pad(U, ((0, HID_pad - HID), (0, V_pad - V)))
    WU = jnp.concatenate([Wp, Up], axis=0).astype(param_dtype)          # (K_pad, V_pad)
    d2 = d.astype(jnp.float32)                                          # (HID,)
    b2 = jnp.pad(b.astype(jnp.float32).reshape(1, V), ((0, 0), (0, V_pad - V)))
    Cq, Hq, WU, d2, b2 = jax.device_put((Cq, Hq, WU, d2, b2))

    itemsize = jnp.dtype(param_dtype).itemsize
    out_itemsize = jnp.dtype(out_dtype).itemsize

    @jax.jit
    def forward(X_idx):
        B = X_idx.shape[0]
        TB, nb, B_pad = _pick_tile(B, tb, 16)

        # Embedding gather + flatten (XLA glue; see TODO above). jnp.take clamps OOB
        # indices, whereas torch.nn.Embedding would raise -- harmless for valid input.
        x = jnp.take(Cq, X_idx, axis=0).reshape(B, F)
        x = jnp.pad(x, ((0, 0), (0, F_pad - F)))                        # (B, F_pad)

        # Hidden path: tiny (B x F_pad x HID) matmul + tanh, computed once and fed to
        # the kernel as part of [x | hidden] (removes cross-tile scratch caching).
        hidden = jnp.tanh(
            d2 + jnp.dot(x, Hq, preferred_element_type=jnp.float32))
        hidden = jnp.pad(hidden.astype(param_dtype),
                         ((0, 0), (0, HID_pad - HID)))                  # (B, HID_pad)

        xh = jnp.concatenate([x, hidden], axis=1)                       # (B, K_pad)
        xh = jnp.pad(xh, ((0, B_pad - B), (0, 0)))                      # (B_pad, K_pad)

        # True double-buffered tile footprint -> scoped VMEM limit (cap 48 MiB: safe
        # headroom on v7x's 64 MiB VMEM, still raises v5e's 16 MiB default when needed).
        per_buf = (K_pad * TN + TB * K_pad) * itemsize + TN * 4 + TB * TN * out_itemsize
        vmem_limit = int(min(max(3 * per_buf + (2 << 20), 16 << 20), 48 << 20))

        flops = 2 * B_pad * K_pad * V_pad
        bytes_accessed = (nv * B_pad * K_pad * itemsize      # xh re-streamed per vocab tile
                          + K_pad * V_pad * itemsize         # WU streamed once
                          + V_pad * 4                        # bias
                          + B_pad * V_pad * out_itemsize)    # logits writeback

        grid_spec = pltpu.PrefetchScalarGridSpec(
            num_scalar_prefetch=0,
            # vocab OUTER, batch inner: the WU / bias block index is constant across
            # consecutive inner steps, so their DMA is issued once per vocab tile.
            grid=(nv, nb),
            in_specs=[
                pl.BlockSpec((TB, K_pad), lambda j, i: (i, 0)),   # [x | hidden]
                pl.BlockSpec((K_pad, TN), lambda j, i: (0, j)),   # [W ; U] vocab tile
                pl.BlockSpec((1, TN), lambda j, i: (0, j)),       # bias vocab tile
            ],
            out_specs=pl.BlockSpec((TB, TN), lambda j, i: (i, j)),
        )

        out = pl.pallas_call(
            _nplm_kernel,
            out_shape=jax.ShapeDtypeStruct((B_pad, V_pad), out_dtype),
            grid_spec=grid_spec,
            compiler_params=pltpu.CompilerParams(
                # No cross-step state -> both axes parallel (engages both TCs on v7x).
                dimension_semantics=("parallel", "parallel"),
                vmem_limit_bytes=vmem_limit,
            ),
            cost_estimate=pl.CostEstimate(
                flops=int(flops),
                transcendentals=0,
                bytes_accessed=int(bytes_accessed),
            ),
        )(xh, WU, b2)

        if B_pad == B and V_pad == V:
            return out
        return out[:B, :V]

    return forward


def nplm_reference(X_idx, C, H, W, d, U, b, *, n_step, embed_size,
                   param_dtype=jnp.float32):
    """Pure-JAX reference; param_dtype matches the kernel's MXU operand precision."""
    B = X_idx.shape[0]
    F = n_step * embed_size
    x = jnp.take(C, X_idx, axis=0).reshape(B, F).astype(param_dtype)
    hidden = jnp.tanh(d.astype(jnp.float32)
                      + jnp.dot(x, H.astype(param_dtype),
                                preferred_element_type=jnp.float32))
    return (b.astype(jnp.float32)
            + jnp.dot(x, W.astype(param_dtype), preferred_element_type=jnp.float32)
            + jnp.dot(hidden.astype(param_dtype), U.astype(param_dtype),
                      preferred_element_type=jnp.float32))


if __name__ == "__main__":
    # Shapes follow the PyTorch __init__; batch / vocab chosen so the (vocab, batch)
    # grid is actually exercised (2 x 2) while keeping MXU-friendly tiles.
    VOCAB_SIZE = 512
    EMBED_SIZE = 30
    HIDDEN_SIZE = 32
    NGRAM_SIZE = 2
    n_step = NGRAM_SIZE - 1        # = 1
    B = 256

    key = jax.random.PRNGKey(0)
    kC, kH, kW, kd, kU, kb, kX = jax.random.split(key, 7)

    C = jax.random.normal(kC, (VOCAB_SIZE, EMBED_SIZE), dtype=jnp.float32)
    H = jax.random.normal(kH, (n_step * EMBED_SIZE, HIDDEN_SIZE), dtype=jnp.float32)
    W = jax.random.normal(kW, (n_step * EMBED_SIZE, VOCAB_SIZE), dtype=jnp.float32)
    d = jax.random.normal(kd, (HIDDEN_SIZE,), dtype=jnp.float32)
    U = jax.random.normal(kU, (HIDDEN_SIZE, VOCAB_SIZE), dtype=jnp.float32)
    b = jax.random.normal(kb, (VOCAB_SIZE,), dtype=jnp.float32)

    X_idx = jax.random.randint(kX, (B, n_step), 0, VOCAB_SIZE, dtype=jnp.int32)

    # One-time parameter prep, then the per-call forward (tb/tn small here so the
    # grid is 2x2; production defaults are tb=256, tn=1024).
    forward = make_nplm_forward(C, H, W, d, U, b,
                                n_step=n_step, embed_size=EMBED_SIZE,
                                param_dtype=jnp.bfloat16, out_dtype=jnp.float32,
                                tb=128, tn=256)
    out = jax.block_until_ready(forward(X_idx))

    ref = nplm_reference(X_idx, C, H, W, d, U, b,
                         n_step=n_step, embed_size=EMBED_SIZE,
                         param_dtype=jnp.bfloat16)
    assert out.shape == (B, VOCAB_SIZE)
    assert jnp.allclose(out, ref, atol=3e-2, rtol=3e-2), "mismatch vs reference"

    print("KERNEL_OK")
</pallas_src>

<mosaic_0001>
module attributes {stable_mosaic.version = 11 : i64} {
  func.func @_nplm_kernel(%arg0: i32, %arg1: i32, %arg2: memref<128x64xbf16, #tpu.memory_space<vmem>>, %arg3: memref<64x256xbf16, #tpu.memory_space<vmem>>, %arg4: memref<1x256xf32, #tpu.memory_space<vmem>>, %arg5: memref<128x256xf32, #tpu.memory_space<vmem>>) attributes {dimension_semantics = [#tpu.dimension_semantics<parallel>, #tpu.dimension_semantics<parallel>], iteration_bounds = array<i64: 2, 2>, scalar_prefetch = 0 : i64, scratch_operands = 0 : i64, tpu.core_type = #tpu.core_type<tc>, window_params = [{transform_indices = @transform_0, window_bounds = array<i64: 128, 64>}, {transform_indices = @transform_1, window_bounds = array<i64: 64, 256>}, {transform_indices = @transform_2, window_bounds = array<i64: 1, 256>}, {transform_indices = @transform_3, window_bounds = array<i64: 128, 256>}]} {
    %c0 = arith.constant 0 : index
    %c0_0 = arith.constant 0 : index
    %0 = vector.load %arg4[%c0, %c0_0] : memref<1x256xf32, #tpu.memory_space<vmem>>, vector<1x256xf32>
    %c0_1 = arith.constant 0 : index
    %c0_2 = arith.constant 0 : index
    %1 = vector.load %arg2[%c0_1, %c0_2] : memref<128x64xbf16, #tpu.memory_space<vmem>>, vector<128x64xbf16>
    %c0_3 = arith.constant 0 : index
    %c0_4 = arith.constant 0 : index
    %2 = vector.load %arg3[%c0_3, %c0_4] : memref<64x256xbf16, #tpu.memory_space<vmem>>, vector<64x256xbf16>
    %cst = arith.constant dense<0.000000e+00> : vector<128x256xf32>
    %3 = tpu.matmul %1, %2, %cst {dimension_numbers = #tpu.dot_dimension_numbers<[1], [0], [0], [1], [0, 0, 1, 1], [], []>} : vector<128x64xbf16>, vector<64x256xbf16>, vector<128x256xf32> -> vector<128x256xf32>
    %4 = vector.broadcast %0 : vector<1x256xf32> to vector<128x256xf32>
    %5 = arith.addf %4, %3 : vector<128x256xf32>
    %c0_5 = arith.constant 0 : index
    %c0_6 = arith.constant 0 : index
    %6 = vector.load %arg5[%c0_5, %c0_6] : memref<128x256xf32, #tpu.memory_space<vmem>>, vector<128x256xf32>
    tpu.vector_store %arg5[%c0_5, %c0_6], %5 {strides = array<i32>} : memref<128x256xf32, #tpu.memory_space<vmem>>, vector<128x256xf32>,
    return
  }
  func.func @transform_0(%arg0: i32, %arg1: i32) -> (i32, i32) {
    %c0_i32 = arith.constant 0 : i32
    %c0_i32_0 = arith.constant 0 : i32
    return %arg1, %c0_i32 : i32, i32
  }
  func.func @transform_1(%arg0: i32, %arg1: i32) -> (i32, i32) {
    %c0_i32 = arith.constant 0 : i32
    %c0_i32_0 = arith.constant 0 : i32
    return %c0_i32, %arg0 : i32, i32
  }
  func.func @transform_2(%arg0: i32, %arg1: i32) -> (i32, i32) {
    %c0_i32 = arith.constant 0 : i32
    %c0_i32_0 = arith.constant 0 : i32
    return %c0_i32, %arg0 : i32, i32
  }
  func.func @transform_3(%arg0: i32, %arg1: i32) -> (i32, i32) {
    %c0_i32 = arith.constant 0 : i32
    return %arg1, %arg0 : i32, i32
  }
}

</mosaic_0001>

<llo_original>
// kernel: forward.1
$region0: #{forward.1}
  #allocation0 [shape = 'u32[]', space=smem, size = 0x4, offset = 0x4, fixed_abs, tag = 'smem constant byte address 0x4 - core index']
  #allocation1 [shape = 'u32[144,128]{1,0:T(1,128)}', space=vmem, size = 0x12000, scoped, tag = 'internal scratch']
  %s0 = inlined_call_operand.vmem [shape: bf16[256,64], index: 0, kind: input, shape index: {}]
  %s1 = inlined_call_operand.vmem [shape: bf16[64,512], index: 1, kind: input, shape index: {}]
  %s2 = inlined_call_operand.vmem [shape: f32[1,512], index: 2, kind: input, shape index: {}]
  %s3 = inlined_call_operand.hbm [shape: f32[256,512], index: 3, kind: output, shape index: {}]
  %s4 = sld [smem:[#allocation0]]
  $region83: #{forward.1} parent=0
    _
  %s6 = ssub.s32 1, %s4
  %s7 = scalar_select 0, %s6, %s4
  $region1: #{forward.1} parent=0
    #allocation2 [shape = 'u8[65536]{0}', space=vmem, size = 0x10000, scoped, tag = 'input window, operand 1']
    #allocation3 [shape = 'u8[262144]{0}', space=vmem, size = 0x40000, scoped, tag = 'output window, operand 0']
    #allocation4 [shape = 's32[2]{0}', space=sflag, size = 0x8, scoped, tag = 'scoped memory for forward.1']
    %8 = vsyncpa [#allocation4], 0
    %s9 = scalar_lea.sflag [#allocation4], 1
    %10 = vsyncpa %s9, 0
    loop: start=0, step=1, limit=6
    $region2: #{forward.1} parent=1 // loop_pre_header
      _
    $region3: #{forward.1} parent=1 // loop_header
      %s12 = sphi 0, %s16
      %p13 = scmp.ge.s32.totalorder %s12, 6
      %s19 = sphi 0, %s31
      %s20 = sphi 0, %s27
      %s21 = sphi 0, %s19
      %s22 = sphi 0, %s20
      %s23 = sphi 0, %s21
      %s24 = sphi 0, %s22
      %s34 = sphi 0, %s36
      %s37 = sphi 0, %s34
      %s38 = sphi 0, %s37
      %s54 = sphi 0, %s38
      %s60 = sphi 0, %s62
      %s63 = sphi 0, %s60
      %s64 = sphi 0, %s63
      %s80 = sphi 0, %s64
      %s86 = sphi 0, %s88
      %s89 = sphi 0, %s86
      %s90 = sphi 0, %s89
      %s106 = sphi 0, %s90
      %s114 = sphi 0, %s116
      %s117 = sphi 0, %s114
      %s118 = sphi 0, %s117
      %s134 = sphi 0, %s118
    $region4: #{forward.1} parent=1 // loop_header_branch
      %15 = sbr.rel (%p13) target = $region8
    $region5: #{forward.1} parent=1 // loop_body
      %s17 = ssub.s32 %s12, 1
      %s18 = ssub.s32 %s12, 2
      %s25 = sadd.s32 1, %s20
      %p26 = scmp.ge.s32.totalorder %s25, 2
      %s27 = scalar_select %p26, 0, %s25
      %s28 = sadd.s32 1, %s19
      %s29 = scalar_select %p26, %s28, %s19
      %p30 = scmp.ge.s32.totalorder %s29, 2
      %s31 = scalar_select %p30, 0, %s29
      %s32 = ssub.s32 %s20, %s27
      %p33 = scmp.eq.s32.totalorder %s32, 0
      %s35 = sadd.s32 %s34, 1
      %s36 = scalar_select %p33, %s34, %s35
      %p39 = pneg %p33
      %p40 = scmp.eq.s32.totalorder %s12, 3
      %p41 = por %p39, %p40
      %p42 = scmp.ne.s32.totalorder %s34, %s37
      %p43 = scmp.eq.s32.totalorder %s12, 0
      %p44 = por %p42, %p43
      %p45 = scmp.ne.s32.totalorder %s34, %s37
      %p46 = scmp.eq.s32.totalorder %s17, 3
      %p47 = por %p45, %p46
      %p48 = scmp.ne.s32.totalorder %s37, %s38
      %p49 = scmp.eq.s32.totalorder %s17, 0
      %p50 = por %p48, %p49
      %p51 = scmp.ne.s32.totalorder %s37, %s38
      %p52 = scmp.eq.s32.totalorder %s18, 3
      %p53 = por %p51, %p52
      %p55 = scmp.ne.s32.totalorder %s38, %s54
      %p56 = scmp.eq.s32.totalorder %s18, 0
      %p57 = por %p55, %p56
      %s58 = ssub.s32 %s19, %s31
      %p59 = scmp.eq.s32.totalorder %s58, 0
      %s61 = sadd.s32 %s60, 1
      %s62 = scalar_select %p59, %s60, %s61
      %p65 = pneg %p59
      %p66 = scmp.eq.s32.totalorder %s12, 3
      %p67 = por %p65, %p66
      %p68 = scmp.ne.s32.totalorder %s60, %s63
      %p69 = scmp.eq.s32.totalorder %s12, 0
      %p70 = por %p68, %p69
      %p71 = scmp.ne.s32.totalorder %s60, %s63
      %p72 = scmp.eq.s32.totalorder %s17, 3
      %p73 = por %p71, %p72
      %p74 = scmp.ne.s32.totalorder %s63, %s64
      %p75 = scmp.eq.s32.totalorder %s17, 0
      %p76 = por %p74, %p75
      %p77 = scmp.ne.s32.totalorder %s63, %s64
      %p78 = scmp.eq.s32.totalorder %s18, 3
      %p79 = por %p77, %p78
      %p81 = scmp.ne.s32.totalorder %s64, %s80
      %p82 = scmp.eq.s32.totalorder %s18, 0
      %p83 = por %p81, %p82
      %s84 = ssub.s32 %s19, %s31
      %p85 = scmp.eq.s32.totalorder %s84, 0
      %s87 = sadd.s32 %s86, 1
      %s88 = scalar_select %p85, %s86, %s87
      %p91 = pneg %p85
      %p92 = scmp.eq.s32.totalorder %s12, 3
      %p93 = por %p91, %p92
      %p94 = scmp.ne.s32.totalorder %s86, %s89
      %p95 = scmp.eq.s32.totalorder %s12, 0
      %p96 = por %p94, %p95
      %p97 = scmp.ne.s32.totalorder %s86, %s89
      %p98 = scmp.eq.s32.totalorder %s17, 3
      %p99 = por %p97, %p98
      %p100 = scmp.ne.s32.totalorder %s89, %s90
      %p101 = scmp.eq.s32.totalorder %s17, 0
      %p102 = por %p100, %p101
      %p103 = scmp.ne.s32.totalorder %s89, %s90
      %p104 = scmp.eq.s32.totalorder %s18, 3
      %p105 = por %p103, %p104
      %p107 = scmp.ne.s32.totalorder %s90, %s106
      %p108 = scmp.eq.s32.totalorder %s18, 0
      %p109 = por %p107, %p108
      %s110 = ssub.s32 %s20, %s27
      %s111 = ssub.s32 %s19, %s31
      %s112 = sor.u32 %s110, %s111
      %p113 = scmp.eq.s32.totalorder %s112, 0
      %s115 = sadd.s32 %s114, 1
      %s116 = scalar_select %p113, %s114, %s115
      %p119 = pneg %p113
      %p120 = scmp.eq.s32.totalorder %s12, 3
      %p121 = por %p119, %p120
      %p122 = scmp.ne.s32.totalorder %s114, %s117
      %p123 = scmp.eq.s32.totalorder %s12, 0
      %p124 = por %p122, %p123
      %p125 = scmp.ne.s32.totalorder %s114, %s117
      %p126 = scmp.eq.s32.totalorder %s17, 3
      %p127 = por %p125, %p126
      %p128 = scmp.ne.s32.totalorder %s117, %s118
      %p129 = scmp.eq.s32.totalorder %s17, 0
      %p130 = por %p128, %p129
      %p131 = scmp.ne.s32.totalorder %s117, %s118
      %p132 = scmp.eq.s32.totalorder %s18, 3
      %p133 = por %p131, %p132
      %p135 = scmp.ne.s32.totalorder %s118, %s134
      %p136 = scmp.eq.s32.totalorder %s18, 0
      %p137 = por %p135, %p136
      %p138 = scmp.le.s32.totalorder 1, %s12
      %p139 = scmp.lt.s32.totalorder %s12, 5
      %p140 = pnand %p138, %p139
      %p141 = pneg %p140
      // Predicated region
      $region9: #{forward.1} parent=5 // pred_check
        _
      $region10: #{forward.1} parent=5 // pred_check_branch
        %143 = sbr.rel (%p140) target = $region12
      $region11: #{forward.1} parent=5 // pred_region
        %s144 = ssub.s32 %s12, 1
      $region12: #{forward.1} parent=5 // pred_fallthru
        _
      %p145 = scmp.lt.s32.totalorder %s12, 4
      // Predicated region
      $region13: #{forward.1} parent=5 // pred_check
        %p146 = pneg %p145
      $region14: #{forward.1} parent=5 // pred_check_branch
        %148 = sbr.rel (%p146) target = $region16
      $region15: #{forward.1} parent=5 // pred_region
        // Predicated region
        $region17: #{forward.1} parent=15 // pred_check
          %p149 = pneg %p44
        $region18: #{forward.1} parent=15 // pred_check_branch
          %151 = sbr.rel (%p149) target = $region20
        $region19: #{forward.1} parent=15 // pred_region
          %s152 = smul.u32 16, %s20
          %p153 = scmp.lt.s32.totalorder %s152, 31
          %s154 = scalar_select %p153, %s152, 31
          %s155 = smul.addr %s154, 4
          %s156 = scalar_lea.vmem %s0, %s155
          %s157 = smul.u32 16, %s20
        $region20: #{forward.1} parent=15 // pred_fallthru
          _
        // Predicated region
        $region21: #{forward.1} parent=15 // pred_check
          %p158 = pneg %p70
        $region22: #{forward.1} parent=15 // pred_check_branch
          %160 = sbr.rel (%p158) target = $region24
        $region23: #{forward.1} parent=15 // pred_region
          %s161 = sand.u32 %s60, 1
          %s162 = sand.u32 %s60, 1
          %s163 = smul.addr %s162, 64
          %s164 = scalar_lea.vmem [#allocation2], %s163
          %s165 = smul.u32 2, %s19
          %s166 = smul.addr %s165, 4
          %s167 = scalar_lea.vmem %s1, %s166
          // Predicated region
          $region25: #{forward.1} parent=23 // pred_check
            _
          $region26: #{forward.1} parent=23 // pred_check_branch
            %169 = sbr.rel (0) target = $region28
          $region27: #{forward.1} parent=23 // pred_region
            // Predicated region
            $region29: #{forward.1} parent=27 // pred_check
              _
            $region30: #{forward.1} parent=27 // pred_check_branch
              %171 = sbr.rel (0) target = $region32
            $region31: #{forward.1} parent=27 // pred_region
              // Predicated region
              $region44: #{forward.1} parent=31 // pred_check
                _
              $region45: #{forward.1} parent=31 // pred_check_branch
                %200 = sbr.rel (0) target = $region47
              $region46: #{forward.1} parent=31 // pred_region
                loop: start=0, step=1, limit=1
                $region48: #{forward.1} parent=46 // loop_pre_header
                  _
                $region49: #{forward.1} parent=46 // loop_header
                  %s202 = sphi 0, %s206
                  %p203 = scmp.ge.s32.totalorder %s202, 1
                  %s207 = sphi %s167, %s167
                  %s208 = sphi %s164, %s164
                $region50: #{forward.1} parent=46 // loop_header_branch
                  %205 = sbr.rel (%p203) target = $region54
                $region51: #{forward.1} parent=46 // loop_body
                  %v209 = vld [vmem:[%s207] sm:$0xff]
                  %210 = vst [vmem:[%s208] sm:$0xff] %v209
                  %v211 = vld [vmem:[%s207 + $0x10] sm:$0xff]
                  %212 = vst [vmem:[%s208 + $0x8] sm:$0xff] %v211
                  %v213 = vld [vmem:[%s207 + $0x20] sm:$0xff]
                  %214 = vst [vmem:[%s208 + $0x10] sm:$0xff] %v213
                  %v215 = vld [vmem:[%s207 + $0x30] sm:$0xff]
                  %216 = vst [vmem:[%s208 + $0x18] sm:$0xff] %v215
                  %v217 = vld [vmem:[%s207 + $0x40] sm:$0xff]
                  %218 = vst [vmem:[%s208 + $0x20] sm:$0xff] %v217
                  %v219 = vld [vmem:[%s207 + $0x50] sm:$0xff]
                  %220 = vst [vmem:[%s208 + $0x28] sm:$0xff] %v219
                  %v221 = vld [vmem:[%s207 + $0x60] sm:$0xff]
                  %222 = vst [vmem:[%s208 + $0x30] sm:$0xff] %v221
                  %v223 = vld [vmem:[%s207 + $0x70] sm:$0xff]
                  %224 = vst [vmem:[%s208 + $0x38] sm:$0xff] %v223
                $region52: #{forward.1} parent=46 // loop_footer
                  %s206 = sadd.s32 1, %s202
                $region53: #{forward.1} parent=46 // loop_footer_branch
                  %201 = sbr.rel target = $region49
                $region54: #{forward.1} parent=46 // loop_exit
                  _
              $region47: #{forward.1} parent=31 // pred_fallthru
                _
              // Predicated region
              $region55: #{forward.1} parent=31 // pred_check
                _
              $region56: #{forward.1} parent=31 // pred_check_branch
                %226 = sbr.rel target = $region58
              $region57: #{forward.1} parent=31 // pred_region
                _
              $region58: #{forward.1} parent=31 // pred_fallthru
                _
            $region32: #{forward.1} parent=27 // pred_fallthru
              _
            // Predicated region
            $region33: #{forward.1} parent=27 // pred_check
              _
            $region34: #{forward.1} parent=27 // pred_check_branch
              %173 = sbr.rel target = $region36
            $region35: #{forward.1} parent=27 // pred_region
              loop: start=0, step=1, limit=1
              $region37: #{forward.1} parent=35 // loop_pre_header
                _
              $region38: #{forward.1} parent=35 // loop_header
                %s176 = sphi 0, %s180
                %p177 = scmp.ge.s32.totalorder %s176, 1
                %s181 = sphi %s167, %s167
                %s182 = sphi %s164, %s164
              $region39: #{forward.1} parent=35 // loop_header_branch
                %179 = sbr.rel (%p177) target = $region43
              $region40: #{forward.1} parent=35 // loop_body
                %v183 = vld [vmem:[%s181] sm:$0xff]
                %184 = vst [vmem:[%s182] sm:$0xff] %v183
                %v185 = vld [vmem:[%s181 + $0x10] sm:$0xff]
                %186 = vst [vmem:[%s182 + $0x8] sm:$0xff] %v185
                %v187 = vld [vmem:[%s181 + $0x20] sm:$0xff]
                %188 = vst [vmem:[%s182 + $0x10] sm:$0xff] %v187
                %v189 = vld [vmem:[%s181 + $0x30] sm:$0xff]
                %190 = vst [vmem:[%s182 + $0x18] sm:$0xff] %v189
                %v191 = vld [vmem:[%s181 + $0x40] sm:$0xff]
                %192 = vst [vmem:[%s182 + $0x20] sm:$0xff] %v191
                %v193 = vld [vmem:[%s181 + $0x50] sm:$0xff]
                %194 = vst [vmem:[%s182 + $0x28] sm:$0xff] %v193
                %v195 = vld [vmem:[%s181 + $0x60] sm:$0xff]
                %196 = vst [vmem:[%s182 + $0x30] sm:$0xff] %v195
                %v197 = vld [vmem:[%s181 + $0x70] sm:$0xff]
                %198 = vst [vmem:[%s182 + $0x38] sm:$0xff] %v197
              $region41: #{forward.1} parent=35 // loop_footer
                %s180 = sadd.s32 1, %s176
              $region42: #{forward.1} parent=35 // loop_footer_branch
                %175 = sbr.rel target = $region38
              $region43: #{forward.1} parent=35 // loop_exit
                _
            $region36: #{forward.1} parent=27 // pred_fallthru
              _
          $region28: #{forward.1} parent=23 // pred_fallthru
            _
          %227 = vnop
        $region24: #{forward.1} parent=15 // pred_fallthru
          _
        // Predicated region
        $region59: #{forward.1} parent=15 // pred_check
          %p228 = pneg %p96
        $region60: #{forward.1} parent=15 // pred_check_branch
          %230 = sbr.rel (%p228) target = $region62
        $region61: #{forward.1} parent=15 // pred_region
          %s231 = smul.u32 2, %s19
          %p232 = scmp.lt.s32.totalorder %s231, 3
          %s233 = scalar_select %p232, %s231, 3
          %s234 = scalar_lea.vmem %s2, %s233
          %s235 = smul.u32 2, %s19
        $region62: #{forward.1} parent=15 // pred_fallthru
          _
      $region16: #{forward.1} parent=5 // pred_fallthru
        _
      %p236 = scmp.le.s32.totalorder 1, %s12
      %p237 = scmp.lt.s32.totalorder %s12, 5
      %p238 = pnand %p236, %p237
      %p239 = pneg %p238
      // Predicated region
      $region63: #{forward.1} parent=5 // pred_check
        _
      $region64: #{forward.1} parent=5 // pred_check_branch
        %241 = sbr.rel (%p238) target = $region66
      $region65: #{forward.1} parent=5 // pred_region
        %s242 = ssub.s32 %s12, 1
        %s243 = sand.u32 %s63, 1
        %s244 = sand.u32 %s63, 1
        %s245 = smul.addr %s244, 64
        %s246 = scalar_lea.vmem [#allocation2], %s245
        // Predicated region
        $region67: #{forward.1} parent=65 // pred_check
          %p247 = pneg %p76
        $region68: #{forward.1} parent=65 // pred_check_branch
          %249 = sbr.rel (%p247) target = $region70
        $region69: #{forward.1} parent=65 // pred_region
          _
        $region70: #{forward.1} parent=65 // pred_fallthru
          _
        %s250 = smul.u32 16, %s22
        %p251 = scmp.lt.s32.totalorder %s250, 31
        %s252 = scalar_select %p251, %s250, 31
        %s253 = smul.addr %s252, 4
        %s254 = scalar_lea.vmem %s0, %s253
        %p255 = pneg %p50
        %p256 = pneg %p47
        %s257 = sand.u32 %s63, 1
        %s258 = sand.u32 %s63, 1
        %s259 = smul.addr %s258, 64
        %s260 = scalar_lea.vmem [#allocation2], %s259
        %p261 = pneg %p76
        %p262 = pneg %p73
        %s263 = smul.u32 2, %s21
        %p264 = scmp.lt.s32.totalorder %s263, 3
        %s265 = scalar_select %p264, %s263, 3
        %s266 = scalar_lea.vmem %s2, %s265
        %p267 = pneg %p102
        %p268 = pneg %p99
        %p269 = pneg %p130
        %p270 = pneg %p127
        %s271 = sand.u32 %s117, 1
        %s272 = scalar_lea.sflag [#allocation4], %s271
        %s273 = sand.u32 %s117, 1
        %s274 = smul.addr %s273, 256
        %s275 = scalar_lea.vmem [#allocation3], %s274
        %s276 = smul.u32 16, %s22
        %p277 = scmp.lt.s32.totalorder %s276, 31
        %s278 = scalar_select %p277, %s276, 31
        %s279 = smul.addr %s278, 4
        %s280 = scalar_lea.vmem %s0, %s279
        %s281 = smul.u32 16, %s22
        %s282 = smul.u32 2, %s21
        %s283 = smul.u32 2, %s21
        %p284 = scmp.lt.s32.totalorder %s283, 3
        %s285 = scalar_select %p284, %s283, 3
        %s286 = scalar_lea.vmem %s2, %s285
        %s287 = smul.u32 2, %s21
        %s288 = smul.u32 16, %s22
        %s289 = smul.u32 2, %s21
        %v291 = vld [vmem:[%s286] sm:$0x3]
        %v292 = vld [vmem:[%s280] sm:$0xf]
        %v293 = vld [vmem:[%s280 + $0x4] sm:$0xf]
        %v294 = vld [vmem:[%s280 + $0x8] sm:$0xf]
        %v295 = vld [vmem:[%s280 + $0xc] sm:$0xf]
        %v296 = vld [vmem:[%s280 + $0x10] sm:$0xf]
        %v297 = vld [vmem:[%s280 + $0x14] sm:$0xf]
        %v298 = vld [vmem:[%s280 + $0x18] sm:$0xf]
        %v299 = vld [vmem:[%s280 + $0x1c] sm:$0xf]
        %v300 = vld [vmem:[%s280 + $0x20] sm:$0xf]
        %v301 = vld [vmem:[%s280 + $0x24] sm:$0xf]
        %v302 = vld [vmem:[%s280 + $0x28] sm:$0xf]
        %v303 = vld [vmem:[%s280 + $0x2c] sm:$0xf]
        %v304 = vld [vmem:[%s280 + $0x30] sm:$0xf]
        %v305 = vld [vmem:[%s280 + $0x34] sm:$0xf]
        %v306 = vld [vmem:[%s280 + $0x38] sm:$0xf]
        %v307 = vld [vmem:[%s280 + $0x3c] sm:$0xf]
        %v308 = vld [vmem:[%s246] sm:$0xff]
        %v309 = vld [vmem:[%s246 + $0x8] sm:$0xff]
        %v310 = vld [vmem:[%s246 + $0x10] sm:$0xff]
        %v311 = vld [vmem:[%s246 + $0x18] sm:$0xff]
        %v312 = vld [vmem:[%s246 + $0x20] sm:$0xff]
        %v313 = vld [vmem:[%s246 + $0x28] sm:$0xff]
        %v314 = vld [vmem:[%s246 + $0x30] sm:$0xff]
        %v315 = vld [vmem:[%s246 + $0x38] sm:$0xff]
        %v332 = vunpack.c.l.b16 %v292
        %v333 = vunpack.c.l.b16 %v293
        %v334 = vunpack.c.l.b16 %v294
        %v335 = vunpack.c.l.b16 %v295
        %v336 = vunpack.c.l.b16 %v296
        %v337 = vunpack.c.l.b16 %v297
        %v338 = vunpack.c.l.b16 %v298
        %v339 = vunpack.c.l.b16 %v299
        %v340 = vunpack.c.l.b16 %v300
        %v341 = vunpack.c.l.b16 %v301
        %v342 = vunpack.c.l.b16 %v302
        %v343 = vunpack.c.l.b16 %v303
        %v344 = vunpack.c.l.b16 %v304
        %v345 = vunpack.c.l.b16 %v305
        %v346 = vunpack.c.l.b16 %v306
        %v347 = vunpack.c.l.b16 %v307
        %v348 = vpack.c.b16 %v333, %v332
        %v349 = vpack.c.b16 %v335, %v334
        %v350 = vpack.c.b16 %v337, %v336
        %v351 = vpack.c.b16 %v339, %v338
        %v352 = vpack.c.b16 %v341, %v340
        %v353 = vpack.c.b16 %v343, %v342
        %v354 = vpack.c.b16 %v345, %v344
        %v355 = vpack.c.b16 %v347, %v346
        %v364 = vunpack.c.l.b16 %v308
        %v365 = vunpack.c.h.b16 %v308
        %v366 = vunpack.c.l.b16 %v309
        %v367 = vunpack.c.h.b16 %v309
        %v368 = vunpack.c.l.b16 %v310
        %v369 = vunpack.c.h.b16 %v310
        %v370 = vunpack.c.l.b16 %v311
        %v371 = vunpack.c.h.b16 %v311
        %v372 = vunpack.c.l.b16 %v312
        %v373 = vunpack.c.h.b16 %v312
        %v374 = vunpack.c.l.b16 %v313
        %v375 = vunpack.c.h.b16 %v313
        %v376 = vunpack.c.l.b16 %v314
        %v377 = vunpack.c.h.b16 %v314
        %v378 = vunpack.c.l.b16 %v315
        %v379 = vunpack.c.h.b16 %v315
        %v380 = vpack.c.b16 %v366, %v364
        %v381 = vpack.c.b16 %v367, %v365
        %v382 = vpack.c.b16 %v370, %v368
        %v383 = vpack.c.b16 %v371, %v369
        %v384 = vpack.c.b16 %v374, %v372
        %v385 = vpack.c.b16 %v375, %v373
        %v386 = vpack.c.b16 %v378, %v376
        %v387 = vpack.c.b16 %v379, %v377
        %vm396 = vcmask 523264
        %v398 = vsel %vm396, %v348, 0
        %v401 = vsel %vm396, %v349, 0
        %v404 = vsel %vm396, %v350, 0
        %v407 = vsel %vm396, %v351, 0
        %v410 = vsel %vm396, %v352, 0
        %v413 = vsel %vm396, %v353, 0
        %v416 = vsel %vm396, %v354, 0
        %v419 = vsel %vm396, %v355, 0
        %421 = vmatprep.subr.bf16.mxu0 %v381
        %422 = vmatpush1.bf16.msra.mxu0 %v380
        %423 = vmatprep.subr.bf16.mxu0 %v383
        %424 = vmatpush1.bf16.msra.mxu0 %v382
        %425 = vmatprep.subr.bf16.mxu0 %v385
        %426 = vmatpush1.bf16.msra.mxu0 %v384
        %427 = vmatprep.subr.bf16.mxu0 %v387
        %428 = vmatpush1.bf16.msra.mxu0 %v386
        %429 = vmatprep.subr.bf16.mxu0 0
        %430 = vmatpush1.bf16.msra.mxu0 0
        %431 = vmatprep.subr.bf16.mxu0 0
        %432 = vmatpush1.bf16.msra.mxu0 0
        %433 = vmatprep.subr.bf16.mxu0 0
        %434 = vmatpush1.bf16.msra.mxu0 0
        %435 = vmatprep.subr.bf16.mxu0 0
        %436 = vmatpush1.bf16.msra.mxu0 0
        %437 = vmatprep.subr.bf16.mxu0 0
        %438 = vmatpush1.bf16.msra.mxu0 0
        %439 = vmatprep.subr.bf16.mxu0 0
        %440 = vmatpush1.bf16.msra.mxu0 0
        %441 = vmatprep.subr.bf16.mxu0 0
        %442 = vmatpush1.bf16.msra.mxu0 0
        %443 = vmatprep.subr.bf16.mxu0 0
        %444 = vmatpush1.bf16.msra.mxu0 0
        %445 = vmatprep.subr.bf16.mxu0 0
        %446 = vmatpush1.bf16.msra.mxu0 0
        %447 = vmatprep.subr.bf16.mxu0 0
        %448 = vmatpush1.bf16.msra.mxu0 0
        %449 = vmatprep.subr.bf16.mxu0 0
        %450 = vmatpush1.bf16.msra.mxu0 0
        %451 = vmatprep.subr.bf16.mxu0 0
        %452 = vmatpush1.bf16.msra.mxu0 0
        %453 = vmatprep.mubr.bf16.mxu0 0
        %454 = vmatmul.mubr.bf16.gmra.mrb[0].mxu0 %v398
        %v455 = vpop.f32.mrb[0].mxu0
        %v456 = vadd.f32 0.0, %v455
        %v457 = vpop.f32.mrb[0].mxu0
        %v458 = vadd.f32 0.0, %v457
        %v459 = vpop.f32.mrb[0].mxu0
        %v460 = vadd.f32 0.0, %v459
        %v461 = vpop.f32.mrb[0].mxu0
        %v462 = vadd.f32 0.0, %v461
        %463 = vmatprep.mubr.bf16.mxu0 0
        %464 = vmatmul.mubr.bf16.gmra.mrb[0].mxu0 %v401
        %v465 = vpop.f32.mrb[0].mxu0
        %v466 = vadd.f32 0.0, %v465
        %v467 = vpop.f32.mrb[0].mxu0
        %v468 = vadd.f32 0.0, %v467
        %v469 = vpop.f32.mrb[0].mxu0
        %v470 = vadd.f32 0.0, %v469
        %v471 = vpop.f32.mrb[0].mxu0
        %v472 = vadd.f32 0.0, %v471
        %473 = vmatprep.mubr.bf16.mxu0 0
        %474 = vmatmul.mubr.bf16.gmra.mrb[0].mxu0 %v404
        %v475 = vpop.f32.mrb[0].mxu0
        %v476 = vadd.f32 0.0, %v475
        %v477 = vpop.f32.mrb[0].mxu0
        %v478 = vadd.f32 0.0, %v477
        %v479 = vpop.f32.mrb[0].mxu0
        %v480 = vadd.f32 0.0, %v479
        %v481 = vpop.f32.mrb[0].mxu0
        %v482 = vadd.f32 0.0, %v481
        %483 = vmatprep.mubr.bf16.mxu0 0
        %484 = vmatmul.mubr.bf16.gmra.mrb[0].mxu0 %v407
        %v485 = vpop.f32.mrb[0].mxu0
        %v486 = vadd.f32 0.0, %v485
        %v487 = vpop.f32.mrb[0].mxu0
        %v488 = vadd.f32 0.0, %v487
        %v489 = vpop.f32.mrb[0].mxu0
        %v490 = vadd.f32 0.0, %v489
        %v491 = vpop.f32.mrb[0].mxu0
        %v492 = vadd.f32 0.0, %v491
        %493 = vmatprep.mubr.bf16.mxu0 0
        %494 = vmatmul.mubr.bf16.gmra.mrb[0].mxu0 %v410
        %v495 = vpop.f32.mrb[0].mxu0
        %v496 = vadd.f32 0.0, %v495
        %v497 = vpop.f32.mrb[0].mxu0
        %v498 = vadd.f32 0.0, %v497
        %v499 = vpop.f32.mrb[0].mxu0
        %v500 = vadd.f32 0.0, %v499
        %v501 = vpop.f32.mrb[0].mxu0
        %v502 = vadd.f32 0.0, %v501
        %503 = vmatprep.mubr.bf16.mxu0 0
        %504 = vmatmul.mubr.bf16.gmra.mrb[0].mxu0 %v413
        %v505 = vpop.f32.mrb[0].mxu0
        %v506 = vadd.f32 0.0, %v505
        %v507 = vpop.f32.mrb[0].mxu0
        %v508 = vadd.f32 0.0, %v507
        %v509 = vpop.f32.mrb[0].mxu0
        %v510 = vadd.f32 0.0, %v509
        %v511 = vpop.f32.mrb[0].mxu0
        %v512 = vadd.f32 0.0, %v511
        %513 = vmatprep.mubr.bf16.mxu0 0
        %514 = vmatmul.mubr.bf16.gmra.mrb[0].mxu0 %v416
        %v515 = vpop.f32.mrb[0].mxu0
        %v516 = vadd.f32 0.0, %v515
        %v517 = vpop.f32.mrb[0].mxu0
        %v518 = vadd.f32 0.0, %v517
        %v519 = vpop.f32.mrb[0].mxu0
        %v520 = vadd.f32 0.0, %v519
        %v521 = vpop.f32.mrb[0].mxu0
        %v522 = vadd.f32 0.0, %v521
        %523 = vmatprep.mubr.bf16.mxu0 0
        %524 = vmatmul.mubr.bf16.gmra.mrb[0].mxu0 %v419
        %v525 = vpop.f32.mrb[0].mxu0
        %v526 = vadd.f32 0.0, %v525
        %v527 = vpop.f32.mrb[0].mxu0
        %v528 = vadd.f32 0.0, %v527
        %v529 = vpop.f32.mrb[0].mxu0
        %v530 = vadd.f32 0.0, %v529
        %v531 = vpop.f32.mrb[0].mxu0
        %v532 = vadd.f32 0.0, %v531
        %533 = vdwg.mxu0
        %v535 = vlaneseq
        %v536 = vshrl.u32 %v535, 7
        %v537 = vsub.s32 0, %v536
        %v538 = vrot.slane %v291, %v537
        %v539 = vlaneseq
        %v540 = vshrl.u32 %v539, 7
        %v541 = vsub.s32 1, %v540
        %v542 = vrot.slane %v291, %v541
        %v545 = vadd.f32 %v538, %v456
        %v546 = vadd.f32 %v542, %v458
        %v547 = vadd.f32 %v538, %v460
        %v548 = vadd.f32 %v542, %v462
        %v549 = vadd.f32 %v538, %v466
        %v550 = vadd.f32 %v542, %v468
        %v551 = vadd.f32 %v538, %v470
        %v552 = vadd.f32 %v542, %v472
        %v553 = vadd.f32 %v538, %v476
        %v554 = vadd.f32 %v542, %v478
        %v555 = vadd.f32 %v538, %v480
        %v556 = vadd.f32 %v542, %v482
        %v557 = vadd.f32 %v538, %v486
        %v558 = vadd.f32 %v542, %v488
        %v559 = vadd.f32 %v538, %v490
        %v560 = vadd.f32 %v542, %v492
        %v561 = vadd.f32 %v538, %v496
        %v562 = vadd.f32 %v542, %v498
        %v563 = vadd.f32 %v538, %v500
        %v564 = vadd.f32 %v542, %v502
        %v565 = vadd.f32 %v538, %v506
        %v566 = vadd.f32 %v542, %v508
        %v567 = vadd.f32 %v538, %v510
        %v568 = vadd.f32 %v542, %v512
        %v569 = vadd.f32 %v538, %v516
        %v570 = vadd.f32 %v542, %v518
        %v571 = vadd.f32 %v538, %v520
        %v572 = vadd.f32 %v542, %v522
        %v573 = vadd.f32 %v538, %v526
        %v574 = vadd.f32 %v542, %v528
        %v575 = vadd.f32 %v538, %v530
        %v576 = vadd.f32 %v542, %v532
        %577 = vst [vmem:[%s275] sm:$0xff] %v545
        %578 = vst [vmem:[%s275 + $0x8] sm:$0xff] %v546
        %579 = vst [vmem:[%s275 + $0x10] sm:$0xff] %v547
        %580 = vst [vmem:[%s275 + $0x18] sm:$0xff] %v548
        %581 = vst [vmem:[%s275 + $0x20] sm:$0xff] %v549
        %582 = vst [vmem:[%s275 + $0x28] sm:$0xff] %v550
        %583 = vst [vmem:[%s275 + $0x30] sm:$0xff] %v551
        %584 = vst [vmem:[%s275 + $0x38] sm:$0xff] %v552
        %585 = vst [vmem:[%s275 + $0x40] sm:$0xff] %v553
        %586 = vst [vmem:[%s275 + $0x48] sm:$0xff] %v554
        %587 = vst [vmem:[%s275 + $0x50] sm:$0xff] %v555
        %588 = vst [vmem:[%s275 + $0x58] sm:$0xff] %v556
        %589 = vst [vmem:[%s275 + $0x60] sm:$0xff] %v557
        %590 = vst [vmem:[%s275 + $0x68] sm:$0xff] %v558
        %591 = vst [vmem:[%s275 + $0x70] sm:$0xff] %v559
        %592 = vst [vmem:[%s275 + $0x78] sm:$0xff] %v560
        %593 = vst [vmem:[%s275 + $0x80] sm:$0xff] %v561
        %594 = vst [vmem:[%s275 + $0x88] sm:$0xff] %v562
        %595 = vst [vmem:[%s275 + $0x90] sm:$0xff] %v563
        %596 = vst [vmem:[%s275 + $0x98] sm:$0xff] %v564
        %597 = vst [vmem:[%s275 + $0xa0] sm:$0xff] %v565
        %598 = vst [vmem:[%s275 + $0xa8] sm:$0xff] %v566
        %599 = vst [vmem:[%s275 + $0xb0] sm:$0xff] %v567
        %600 = vst [vmem:[%s275 + $0xb8] sm:$0xff] %v568
        %601 = vst [vmem:[%s275 + $0xc0] sm:$0xff] %v569
        %602 = vst [vmem:[%s275 + $0xc8] sm:$0xff] %v570
        %603 = vst [vmem:[%s275 + $0xd0] sm:$0xff] %v571
        %604 = vst [vmem:[%s275 + $0xd8] sm:$0xff] %v572
        %605 = vst [vmem:[%s275 + $0xe0] sm:$0xff] %v573
        %606 = vst [vmem:[%s275 + $0xe8] sm:$0xff] %v574
        %607 = vst [vmem:[%s275 + $0xf0] sm:$0xff] %v575
        %608 = vst [vmem:[%s275 + $0xf8] sm:$0xff] %v576
        %s609 = sand.u32 %s117, 1
        %s610 = scalar_lea.sflag [#allocation4], %s609
        %s611 = sand.u32 %s117, 1
        %s612 = smul.addr %s611, 256
        %s613 = scalar_lea.vmem [#allocation3], %s612
        // Predicated region
        $region71: #{forward.1} parent=65 // pred_check
          %p614 = pneg %p127
        $region72: #{forward.1} parent=65 // pred_check_branch
          %616 = sbr.rel (%p614) target = $region74
        $region73: #{forward.1} parent=65 // pred_region
          %s617 = smul.u32 16, %s22
          %s618 = smul.u32 2, %s21
          %s620 = ssub.s32 4096, 4096
          %621 = vsyncadd %s610, %s620
          %s622 = smul.addr %s617, 4
          %s623 = sadd.s32 %s618, %s622
          %s624 = smul.addr %s623, 128
          %s625 = scalar_lea.hbm %s3, %s624
          %s626 = sshll.u32 %s613, 4
          %s627 = int_to_ptr.vmem [resolvable:$true] %s626
          %632 = dma.vmem_to_hbm [thread:$0]  %s627, 4096, %s625, %s610, 256, 512, 16
        $region74: #{forward.1} parent=65 // pred_fallthru
          _
      $region66: #{forward.1} parent=5 // pred_fallthru
        _
      %p633 = scmp.le.s32.totalorder 2, %s12
      // Predicated region
      $region75: #{forward.1} parent=5 // pred_check
        %p634 = pneg %p633
      $region76: #{forward.1} parent=5 // pred_check_branch
        %636 = sbr.rel (%p634) target = $region78
      $region77: #{forward.1} parent=5 // pred_region
        %s637 = ssub.s32 %s12, 2
        // Predicated region
        $region79: #{forward.1} parent=77 // pred_check
          %p638 = pneg %p133
        $region80: #{forward.1} parent=77 // pred_check_branch
          %640 = sbr.rel (%p638) target = $region82
        $region81: #{forward.1} parent=77 // pred_region
          %s641 = sand.u32 %s118, 1
          %s642 = scalar_lea.sflag [#allocation4], %s641
          %s643 = sand.u32 %s118, 1
          %s644 = smul.addr %s643, 256
          %s645 = scalar_lea.vmem [#allocation3], %s644
          %646 = dma.done %s642, 4096
        $region82: #{forward.1} parent=77 // pred_fallthru
          _
      $region78: #{forward.1} parent=5 // pred_fallthru
        _
    $region6: #{forward.1} parent=1 // loop_footer
      %s16 = sadd.s32 1, %s12
    $region7: #{forward.1} parent=1 // loop_footer_branch
      %11 = sbr.rel target = $region3
    $region8: #{forward.1} parent=1 // loop_exit
      _
    %647 = vsyncpa [#allocation4], 1
    %s648 = scalar_lea.sflag [#allocation4], 1
    %649 = vsyncpa %s648, 1

</llo_original>
